<compile_context>
chip_gen: v7x
topology: tpu7x:2x2x1
jax: 0.10.0
libtpu: 0.0.40
codegen_flags: <defaults>
</compile_context>

<pallas_src>
import functools
import math

import jax
import jax.numpy as jnp
from jax.experimental import pallas as pl
from jax.experimental.pallas import tpu as pltpu


_LANE = 128
_SUBLANE = 8


def _ceil_div(a, b):
    return -(-a // b)


def _round_up(a, b):
    return _ceil_div(a, b) * b


def _speculator_kernel(x_ref, gamma_ref, beta_ref, o_ref, *, compute_dtype):
    x = x_ref[...].astype(compute_dtype)
    gamma = gamma_ref[...].astype(compute_dtype)      # (1, bc) -> broadcasts over rows
    beta = beta_ref[...].astype(compute_dtype)        # (1, bc)
    half = jnp.asarray(0.5, compute_dtype)
    one = jnp.asarray(1.0, compute_dtype)
    # sigmoid(z) = 0.5*(tanh(z/2) + 1): one EUP transcendental instead of exp+divide.
    gate = half * (jnp.tanh(half * (beta * x)) + one)
    o_ref[...] = ((gamma + gate * (one - gamma)) * x).astype(o_ref.dtype)


def _bf16_math_ok():
    # v5e (and older) have no bf16 VPU/EUP -> keep f32 compute there.
    try:
        kind = jax.devices()[0].device_kind.lower()
    except Exception:
        return False
    return not any(v in kind for v in ("v2", "v3", "v4", "v5"))


def _compute_dtype_for(x_dtype):
    if x_dtype == jnp.bfloat16 and _bf16_math_ok():
        return jnp.bfloat16
    return jnp.float32


def _vmem_budget():
    # Derive limits from the chip's physical VMEM (v7x: 64 MiB/TC, v5e/v6e: 128 MiB).
    try:
        cap = int(pltpu.get_tpu_info().vmem_capacity_bytes)
    except Exception:
        cap = 64 << 20  # most conservative current generation (v7x per-TC)
    vmem_limit = min((cap * 3) // 4, 96 << 20)
    tile_bytes = vmem_limit // 5  # 2 input + 2 output double-buffers + headroom
    return vmem_limit, tile_bytes


def _choose_tiles(rows, cols, itemsize, tile_bytes):
    # Dtype-native sublane multiple: 8 for f32, 16 for bf16, 32 for int8/fp8.
    sub = max(_SUBLANE, 32 // itemsize)
    total_bytes = rows * cols * itemsize

    # Prefer full-row (fully contiguous DMA) blocks; tile the feature axis only
    # if even a minimal sub-row slab of the full width overflows the tile budget.
    if cols * sub * itemsize <= tile_bytes:
        block_cols = cols
    else:
        units = cols // _LANE                       # cols is a multiple of 128 here
        max_units = max(1, tile_bytes // (_LANE * sub * itemsize))
        block_units = 1
        for m in range(min(units, max_units), 0, -1):
            if units % m == 0:                      # divisor -> no partial edge block
                block_units = m
                break
        if block_units * 4 < min(units, max_units): # divisor too small; accept edge block
            block_units = min(units, max_units)
        block_cols = block_units * _LANE

    # Rows: fill the (dtype-aware) byte budget; no artificial cap.
    budget_rows = max(sub, (tile_bytes // (block_cols * itemsize)) // sub * sub)

    if rows <= budget_rows:
        block_rows = rows                           # full-extent block is always legal
        # v7x has 2 TensorCores: for non-trivial sizes keep >= 2 balanced row steps
        # so the second core isn't idle (harmless on single-core v5e/v6e).
        if block_cols == cols and total_bytes > (1 << 20) and rows > sub:
            half = _round_up(_ceil_div(rows, 2), sub)
            if half < rows:
                block_rows = half
    else:
        nsteps = _ceil_div(rows, budget_rows)
        block_rows = min(_round_up(_ceil_div(rows, nsteps), sub), budget_rows)
    return block_rows, block_cols


def _run_folded(x2, gamma, beta, k):
    """x2: (B, D) with B % k == 0, k*D a multiple of 128."""
    B, D = x2.shape
    R, C = B // k, k * D
    xk = x2.reshape(R, C)                           # free reshape (row-major)
    if k > 1:
        gamma_k = jnp.tile(gamma, k).reshape(1, C)
        beta_k = jnp.tile(beta, k).reshape(1, C)
    else:
        gamma_k = gamma.reshape(1, C)
        beta_k = beta.reshape(1, C)

    itemsize = jnp.dtype(x2.dtype).itemsize
    vmem_limit, tile_bytes = _vmem_budget()
    block_rows, block_cols = _choose_tiles(R, C, itemsize, tile_bytes)
    grid = (pl.cdiv(C, block_cols), pl.cdiv(R, block_rows))  # cols outer/slow

    kernel = functools.partial(
        _speculator_kernel, compute_dtype=_compute_dtype_for(x2.dtype)
    )
    out = pl.pallas_call(
        kernel,
        out_shape=jax.ShapeDtypeStruct((R, C), x2.dtype),
        grid_spec=pltpu.PrefetchScalarGridSpec(
            num_scalar_prefetch=0,
            grid=grid,
            in_specs=[
                pl.BlockSpec((block_rows, block_cols), lambda j, i: (i, j)),
                pl.BlockSpec((1, block_cols), lambda j, i: (0, j)),
                pl.BlockSpec((1, block_cols), lambda j, i: (0, j)),
            ],
            out_specs=pl.BlockSpec((block_rows, block_cols), lambda j, i: (i, j)),
        ),
        compiler_params=pltpu.CompilerParams(
            dimension_semantics=("parallel", "parallel"),
            vmem_limit_bytes=vmem_limit,
        ),
    )(xk, gamma_k, beta_k)
    return out.reshape(B, D)


def _speculator_jax(x2, gamma, beta):
    # Plain-JAX fallback for tiny leftovers (matches kernel: f32 math, cast back).
    xf = x2.astype(jnp.float32)
    g = gamma.astype(jnp.float32)
    b = beta.astype(jnp.float32)
    return ((g + jax.nn.sigmoid(b * xf) * (1.0 - g)) * xf).astype(x2.dtype)


def speculator(x, gamma, beta):
    """Speculator activation. x: (..., D); gamma/beta: (D,)."""
    orig_shape = x.shape
    D = orig_shape[-1]
    x2 = x.reshape(-1, D)
    B = x2.shape[0]

    k = _LANE // math.gcd(D, _LANE)
    rem = B % k
    if rem == 0:
        out2 = _run_folded(x2, gamma, beta, k)
    else:
        main = B - rem
        if main == 0:
            # Fewer rows than one fold group: kernel launch would be pure overhead.
            out2 = _speculator_jax(x2, gamma, beta)
        else:
            # No full-array pad/slice HBM passes: kernel on the folded bulk,
            # plain JAX on the (<k)-row tail.
            out_main = _run_folded(x2[:main], gamma, beta, k)
            out_tail = _speculator_jax(x2[main:], gamma, beta)
            out2 = jnp.concatenate([out_main, out_tail], axis=0)
    return out2.reshape(orig_shape)


def speculator_ref(x, gamma, beta):
    return (gamma + jax.nn.sigmoid(beta * x) * (1.0 - gamma)) * x


if __name__ == "__main__":
    key = jax.random.PRNGKey(0)
    k_x, k_g, k_b = jax.random.split(key, 3)

    batch, dim_input = 8, 32
    x = jax.random.normal(k_x, (batch, dim_input), dtype=jnp.float32)
    # nn.init.normal_ on torch.empty(dim_input) -> standard-normal parameters
    gamma = jax.random.normal(k_g, (dim_input,), dtype=jnp.float32)
    beta = jax.random.normal(k_b, (dim_input,), dtype=jnp.float32)

    out = speculator(x, gamma, beta)
    jax.block_until_ready(out)

    expected = speculator_ref(x, gamma, beta)
    assert out.shape == x.shape and out.dtype == x.dtype
    # tanh-form sigmoid vs logistic: identical math, ~1e-7 numerical difference.
    assert jnp.allclose(out, expected, atol=1e-5, rtol=1e-5)
    print("KERNEL_OK")
</pallas_src>

<mosaic_0001>
module attributes {stable_mosaic.version = 11 : i64} {
  func.func @_speculator_kernel(%arg0: i32, %arg1: i32, %arg2: memref<2x128xf32, #tpu.memory_space<vmem>>, %arg3: memref<1x128xf32, #tpu.memory_space<vmem>>, %arg4: memref<1x128xf32, #tpu.memory_space<vmem>>, %arg5: memref<2x128xf32, #tpu.memory_space<vmem>>) attributes {dimension_semantics = [#tpu.dimension_semantics<parallel>, #tpu.dimension_semantics<parallel>], iteration_bounds = array<i64: 1, 1>, scalar_prefetch = 0 : i64, scratch_operands = 0 : i64, tpu.core_type = #tpu.core_type<tc>, window_params = [{transform_indices = @transform_0, window_bounds = array<i64: 2, 128>}, {transform_indices = @transform_1, window_bounds = array<i64: 1, 128>}, {transform_indices = @transform_2, window_bounds = array<i64: 1, 128>}, {transform_indices = @transform_3, window_bounds = array<i64: 2, 128>}]} {
    %c0 = arith.constant 0 : index
    %c0_0 = arith.constant 0 : index
    %0 = vector.load %arg2[%c0, %c0_0] : memref<2x128xf32, #tpu.memory_space<vmem>>, vector<2x128xf32>
    %c0_1 = arith.constant 0 : index
    %c0_2 = arith.constant 0 : index
    %1 = vector.load %arg3[%c0_1, %c0_2] : memref<1x128xf32, #tpu.memory_space<vmem>>, vector<1x128xf32>
    %c0_3 = arith.constant 0 : index
    %c0_4 = arith.constant 0 : index
    %2 = vector.load %arg4[%c0_3, %c0_4] : memref<1x128xf32, #tpu.memory_space<vmem>>, vector<1x128xf32>
    %3 = vector.broadcast %2 : vector<1x128xf32> to vector<2x128xf32>
    %4 = arith.mulf %3, %0 : vector<2x128xf32>
    %cst = arith.constant 5.000000e-01 : f32
    %5 = vector.broadcast %cst : f32 to vector<2x128xf32>
    %6 = arith.mulf %5, %4 : vector<2x128xf32>
    %7 = math.tanh %6 : vector<2x128xf32>
    %cst_5 = arith.constant 1.000000e+00 : f32
    %8 = vector.broadcast %cst_5 : f32 to vector<2x128xf32>
    %9 = arith.addf %7, %8 : vector<2x128xf32>
    %cst_6 = arith.constant 5.000000e-01 : f32
    %10 = vector.broadcast %cst_6 : f32 to vector<2x128xf32>
    %11 = arith.mulf %10, %9 : vector<2x128xf32>
    %cst_7 = arith.constant 1.000000e+00 : f32
    %12 = vector.broadcast %cst_7 : f32 to vector<1x128xf32>
    %13 = arith.subf %12, %1 : vector<1x128xf32>
    %14 = vector.broadcast %13 : vector<1x128xf32> to vector<2x128xf32>
    %15 = arith.mulf %11, %14 : vector<2x128xf32>
    %16 = vector.broadcast %1 : vector<1x128xf32> to vector<2x128xf32>
    %17 = arith.addf %16, %15 : vector<2x128xf32>
    %18 = arith.mulf %17, %0 : vector<2x128xf32>
    %c0_8 = arith.constant 0 : index
    %c0_9 = arith.constant 0 : index
    %19 = vector.load %arg5[%c0_8, %c0_9] : memref<2x128xf32, #tpu.memory_space<vmem>>, vector<2x128xf32>
    tpu.vector_store %arg5[%c0_8, %c0_9], %18 {strides = array<i32>} : memref<2x128xf32, #tpu.memory_space<vmem>>, vector<2x128xf32>,
    return
  }
  func.func @transform_0(%arg0: i32, %arg1: i32) -> (i32, i32) {
    %c0_i32 = arith.constant 0 : i32
    return %arg1, %arg0 : i32, i32
  }
  func.func @transform_1(%arg0: i32, %arg1: i32) -> (i32, i32) {
    %c0_i32 = arith.constant 0 : i32
    %c0_i32_0 = arith.constant 0 : i32
    return %c0_i32, %arg0 : i32, i32
  }
  func.func @transform_2(%arg0: i32, %arg1: i32) -> (i32, i32) {
    %c0_i32 = arith.constant 0 : i32
    %c0_i32_0 = arith.constant 0 : i32
    return %c0_i32, %arg0 : i32, i32
  }
  func.func @transform_3(%arg0: i32, %arg1: i32) -> (i32, i32) {
    %c0_i32 = arith.constant 0 : i32
    return %arg1, %arg0 : i32, i32
  }
}

</mosaic_0001>

<llo_original>
// kernel: tpu_custom_call.1
$region0: #{tpu_custom_call.1}
  #allocation0 [shape = 'u32[]', space=smem, size = 0x4, offset = 0x4, fixed_abs, tag = 'smem constant byte address 0x4 - core index']
  #allocation1 [shape = 'u32[144,128]{1,0:T(1,128)}', space=vmem, size = 0x12000, scoped, tag = 'internal scratch']
  %s0 = inlined_call_operand.hbm [shape: f32[2,128], index: 0, kind: input, shape index: {}]
  %s1 = inlined_call_operand.vmem [shape: f32[1,128], index: 1, kind: input, shape index: {}]
  %s2 = inlined_call_operand.vmem [shape: f32[1,128], index: 2, kind: input, shape index: {}]
  %s3 = inlined_call_operand.hbm [shape: f32[2,128], index: 3, kind: output, shape index: {}]
  %s4 = sld [smem:[#allocation0]]
  $region26: #{tpu_custom_call.1} parent=0
    _
  %s6 = ssub.s32 1, %s4
  %s7 = scalar_select 0, %s6, %s4
  $region1: #{tpu_custom_call.1} parent=0
    #allocation2 [shape = 'u8[1024]{0}', space=vmem, size = 0x400, scoped, tag = 'input window, operand 0, single buffered']
    #allocation3 [shape = 's32[1]{0}', space=sflag, size = 0x4, scoped, tag = 'scoped memory for tpu_custom_call.1']
    #allocation4 [shape = 's32[1]{0}', space=sflag, size = 0x4, scoped, tag = 'scoped memory for tpu_custom_call.1']
    #allocation5 [shape = 'u8[1024]{0}', space=vmem, size = 0x400, scoped, tag = 'output window, operand 0, single buffered']
    %8 = vsyncpa [#allocation3], 0
    %9 = vsyncpa [#allocation4], 0
    // Predicated region
    $region2: #{tpu_custom_call.1} parent=1 // pred_check
      _
    $region3: #{tpu_custom_call.1} parent=1 // pred_check_branch
      %11 = sbr.rel (0) target = $region5
    $region4: #{tpu_custom_call.1} parent=1 // pred_region
      %s13 = ssub.s32 32, 32
      %14 = vsyncadd [#allocation3], %s13
      %s16 = sshll.u32 [#allocation2], 4
      %s17 = int_to_ptr.vmem [resolvable:$true] %s16
      %19 = dma.hbm_to_vmem [thread:$0]  %s0, 32, %s17, [#allocation3]
    $region5: #{tpu_custom_call.1} parent=1 // pred_fallthru
      _
    // Predicated region
    $region6: #{tpu_custom_call.1} parent=1 // pred_check
      _
    $region7: #{tpu_custom_call.1} parent=1 // pred_check_branch
      %21 = sbr.rel (0) target = $region9
    $region8: #{tpu_custom_call.1} parent=1 // pred_region
      _
    $region9: #{tpu_custom_call.1} parent=1 // pred_fallthru
      _
    // Predicated region
    $region10: #{tpu_custom_call.1} parent=1 // pred_check
      _
    $region11: #{tpu_custom_call.1} parent=1 // pred_check_branch
      %23 = sbr.rel (0) target = $region13
    $region12: #{tpu_custom_call.1} parent=1 // pred_region
      _
    $region13: #{tpu_custom_call.1} parent=1 // pred_fallthru
      _
    // Predicated region
    $region14: #{tpu_custom_call.1} parent=1 // pred_check
      _
    $region15: #{tpu_custom_call.1} parent=1 // pred_check_branch
      %25 = sbr.rel (0) target = $region17
    $region16: #{tpu_custom_call.1} parent=1 // pred_region
      %26 = dma.done [#allocation3], 32
    $region17: #{tpu_custom_call.1} parent=1 // pred_fallthru
      _
    %v27 = vld [vmem:[#allocation2] sm:$0x3]
    %v28 = vld [vmem:[%s1] sm:$0x1]
    %v29 = vld [vmem:[%s2] sm:$0x1]
    %v31 = vlaneseq
    %v32 = vshrl.u32 %v31, 7
    %v33 = vsub.s32 0, %v32
    %v34 = vrot.slane %v29, %v33
    %v36 = vmul.f32 %v34, %v27
    %v37 = vmul.f32 %v36, 0.5
    %v38 = vtanh.pop %v37
    %v39 = vadd.f32 %v38, 1.0
    %v40 = vmul.f32 %v39, 0.5
    %v41 = vsub.f32 1.0, %v28
    %v43 = vlaneseq
    %v44 = vshrl.u32 %v43, 7
    %v45 = vsub.s32 0, %v44
    %v46 = vrot.slane %v41, %v45
    %v48 = vmul.f32 %v40, %v46
    %v50 = vlaneseq
    %v51 = vshrl.u32 %v50, 7
    %v52 = vsub.s32 0, %v51
    %v53 = vrot.slane %v28, %v52
    %v55 = vadd.f32 %v53, %v48
    %v56 = vmul.f32 %v55, %v27
    %57 = vst [vmem:[#allocation5] sm:$0x3] %v56
    // Predicated region
    $region18: #{tpu_custom_call.1} parent=1 // pred_check
      _
    $region19: #{tpu_custom_call.1} parent=1 // pred_check_branch
      %59 = sbr.rel (0) target = $region21
    $region20: #{tpu_custom_call.1} parent=1 // pred_region
      %s61 = ssub.s32 32, 32
      %62 = vsyncadd [#allocation4], %s61
      %s64 = sshll.u32 [#allocation5], 4
      %s65 = int_to_ptr.vmem [resolvable:$true] %s64
      %67 = dma.vmem_to_hbm [thread:$0]  %s65, 32, %s3, [#allocation4]
    $region21: #{tpu_custom_call.1} parent=1 // pred_fallthru
      _
    // Predicated region
    $region22: #{tpu_custom_call.1} parent=1 // pred_check
      _
    $region23: #{tpu_custom_call.1} parent=1 // pred_check_branch
      %69 = sbr.rel (0) target = $region25
    $region24: #{tpu_custom_call.1} parent=1 // pred_region
      %70 = dma.done [#allocation4], 32
    $region25: #{tpu_custom_call.1} parent=1 // pred_fallthru
      _
    %71 = vsyncpa [#allocation3], 1
    %72 = vsyncpa [#allocation4], 1

</llo_original>
